<compile_context>
chip_gen: v5e
topology: v5e:2x2
jax: 0.10.0
libtpu: 0.0.40
codegen_flags: <defaults>
</compile_context>

<pallas_src>
import functools

import jax
import jax.numpy as jnp
from jax.experimental import pallas as pl
from jax.experimental.pallas import tpu as pltpu

EMB_DIM = 32              # embedding_dim
VOCAB = 16                # vocab_size (number of codebook entries)
COMMIT_COST = 0.25        # commitment_cost
DEFAULT_BLOCK_ROWS = 4096  # rows of flattened input per grid step (multiple of 128)


# ----------------------------------------------------------------------------
# Kernel factory (closes over static sizes so padded rows can be masked cheaply)
# ----------------------------------------------------------------------------
def _make_vq_kernel(n_valid: int, n_pad: int, tn: int, k: int):
    needs_mask = (n_pad != n_valid)

    def vq_kernel(x_ref, emb_ref, b2_ref, zq_ref, idx_ref, sse_ref, cnt_ref):
        x = x_ref[...]            # (TN, D) flattened-input tile, f32
        emb = emb_ref[...]        # (K, D)  codebook (resident)
        b2 = b2_ref[...]          # (K, 1)  ||e_k||^2 (resident, hoisted out of kernel)

        # PyTorch spec: ab = 2 * flat @ W.T ; distances = a2 + b2 - 2 * ab  (net -4*dot).
        # a2 is constant along the codebook axis, so it never changes the argmin; drop it.
        # Scores are built transposed (K, TN) so min/argmin are sublane reductions and the
        # index result is a lane-dense (1, TN) row.
        dot = jax.lax.dot_general(emb, x, (((1,), (1,)), ((), ())),
                                  preferred_element_type=jnp.float32)      # (K, TN)
        score_t = b2 - 4.0 * dot                                           # (K, TN)

        smin = jnp.min(score_t, axis=0, keepdims=True)                     # (1, TN)
        row = jax.lax.broadcasted_iota(jnp.int32, score_t.shape, 0)        # (K, TN)
        idx = jnp.min(jnp.where(score_t == smin, row, jnp.int32(k)),
                      axis=0, keepdims=True)                               # (1, TN)
        enc_t = (row == idx).astype(jnp.float32)                           # (K, TN) one-hot^T

        # quantized = encodings @ codebook == enc_t^T @ emb (exact codebook rows)
        quantized = jax.lax.dot_general(enc_t, emb, (((0,), (0,)), ((), ())),
                                        preferred_element_type=jnp.float32)  # (TN, D)

        zq_ref[...] = x + (quantized - x)   # straight-through estimator, forward value
        idx_ref[...] = idx

        # Per-tile partial statistics (finished in the JAX wrapper).
        err = quantized - x
        if needs_mask:
            base = pl.program_id(0) * tn
            rid = base + jax.lax.broadcasted_iota(jnp.int32, (tn, 1), 0)   # (TN, 1)
            vrow = (rid < n_valid).astype(jnp.float32)
            cid = base + jax.lax.broadcasted_iota(jnp.int32, (1, tn), 1)   # (1, TN)
            vcol = (cid < n_valid).astype(jnp.float32)
            sse_ref[...] = jnp.sum(err * err * vrow, keepdims=True)        # (1, 1)
            cnt_ref[...] = jnp.sum(enc_t * vcol, axis=1, keepdims=True)    # (K, 1)
        else:
            sse_ref[...] = jnp.sum(err * err, keepdims=True)               # (1, 1)
            cnt_ref[...] = jnp.sum(enc_t, axis=1, keepdims=True)           # (K, 1)

    return vq_kernel


# ----------------------------------------------------------------------------
# Wrapper
# ----------------------------------------------------------------------------
@functools.partial(jax.jit, static_argnames=("block_rows",))
def vector_quantizer_forward(inputs, embedding, commitment_cost=COMMIT_COST,
                             block_rows=DEFAULT_BLOCK_ROWS):
    """inputs: (B, L, D) f32; embedding: (K, D) f32 codebook.

    Returns (quantized, encoding_indices, loss, perplexity) matching the PyTorch forward.
    """
    assert block_rows % 128 == 0, "block_rows must be a multiple of 128"
    B, L, D = inputs.shape
    K = embedding.shape[0]
    N = B * L

    flat = inputs.reshape(N, D).astype(jnp.float32)
    emb = embedding.astype(jnp.float32)

    # Tile size: whole array (rounded up to a sublane multiple) when small, else a
    # lane-aligned tile so the (1, TN) index row stays an unmasked lane-dense store.
    if N <= block_rows:
        tn = ((N + 7) // 8) * 8
    else:
        tn = block_rows
    num_tiles = pl.cdiv(N, tn)
    n_pad = num_tiles * tn
    if n_pad != N:
        flat = jnp.pad(flat, ((0, n_pad - N), (0, 0)))

    b2 = jnp.sum(emb * emb, axis=1, keepdims=True)   # (K, 1), hoisted out of per-tile body

    kernel = _make_vq_kernel(N, n_pad, tn, K)
    zq_flat, idx_row, sse_p, cnt_p = pl.pallas_call(
        kernel,
        grid=(num_tiles,),
        in_specs=[
            pl.BlockSpec((tn, D), lambda i: (i, 0)),          # x tile
            pl.BlockSpec((K, D), lambda i: (0, 0)),           # codebook (resident)
            pl.BlockSpec((K, 1), lambda i: (0, 0)),           # ||e||^2 (resident)
        ],
        out_specs=(
            pl.BlockSpec((tn, D), lambda i: (i, 0)),          # quantized tile
            pl.BlockSpec((1, tn), lambda i: (0, i)),          # indices (lane-dense row)
            pl.BlockSpec((None, 1, 1), lambda i: (i, 0, 0)),  # per-tile SSE partial
            pl.BlockSpec((None, K, 1), lambda i: (i, 0, 0)),  # per-tile codebook counts
        ),
        out_shape=(
            jax.ShapeDtypeStruct((n_pad, D), jnp.float32),
            jax.ShapeDtypeStruct((1, n_pad), jnp.int32),
            jax.ShapeDtypeStruct((num_tiles, 1, 1), jnp.float32),
            jax.ShapeDtypeStruct((num_tiles, K, 1), jnp.float32),
        ),
        compiler_params=pltpu.CompilerParams(
            dimension_semantics=("parallel",),      # megacore sharding on v7x
            vmem_limit_bytes=32 * 1024 * 1024,
        ),
    )(flat, emb, b2)

    quantized = zq_flat[:N].reshape(B, L, D)
    encoding_indices = idx_row[0, :N].reshape(B, L)

    # Finish the (tiny) reductions outside the kernel.
    mse = jnp.sum(sse_p) / (N * D)
    loss = (1.0 + commitment_cost) * mse            # q_latent_loss + cc * e_latent_loss
    avg_probs = jnp.sum(cnt_p, axis=0)[:, 0] / N
    perplexity = jnp.exp(-jnp.sum(avg_probs * jnp.log(avg_probs + 1e-10)))
    return quantized, encoding_indices, loss, perplexity


# ----------------------------------------------------------------------------
# Pure-JAX reference (mirrors the PyTorch forward exactly, incl. the -4*matmul quirk)
# ----------------------------------------------------------------------------
def vq_reference(inputs, embedding, commitment_cost=COMMIT_COST):
    B, L, D = inputs.shape
    flat = inputs.reshape(-1, D)
    a2 = jnp.sum(flat ** 2, axis=1, keepdims=True)
    b2 = jnp.sum(embedding ** 2, axis=1)
    ab = 2.0 * (flat @ embedding.T)
    distances = a2 + b2 - 2.0 * ab
    idx = jnp.argmin(distances, axis=1)
    enc = jax.nn.one_hot(idx, embedding.shape[0], dtype=jnp.float32)
    quantized = enc @ embedding
    e_latent = jnp.mean((quantized - flat) ** 2)
    loss = e_latent + commitment_cost * e_latent
    zq = flat + (quantized - flat)
    avg = jnp.mean(enc, axis=0)
    perp = jnp.exp(-jnp.sum(avg * jnp.log(avg + 1e-10)))
    return zq.reshape(B, L, D), idx.reshape(B, L), loss, perp


if __name__ == "__main__":
    key = jax.random.PRNGKey(0)
    kx, ke, kx2 = jax.random.split(key, 3)

    # ---- small test (single tile) ----
    B, L = 2, 8
    x = jax.random.normal(kx, (B, L, EMB_DIM), jnp.float32)
    # nn.Embedding weight init: uniform_(-1/num_embeddings, 1/num_embeddings)
    emb = jax.random.uniform(ke, (VOCAB, EMB_DIM), jnp.float32,
                             minval=-1.0 / VOCAB, maxval=1.0 / VOCAB)

    zq, idx, loss, perp = vector_quantizer_forward(x, emb)
    jax.block_until_ready((zq, idx, loss, perp))

    assert zq.shape == (B, L, EMB_DIM) and zq.dtype == jnp.float32
    assert idx.shape == (B, L) and idx.dtype == jnp.int32
    assert loss.shape == () and perp.shape == ()

    zq_r, idx_r, loss_r, perp_r = vq_reference(x, emb)
    assert jnp.array_equal(idx, idx_r), "encoding indices mismatch"
    assert jnp.allclose(zq, zq_r, atol=1e-5, rtol=1e-5), "quantized mismatch"
    assert jnp.allclose(loss, loss_r, atol=1e-5, rtol=1e-5), "loss mismatch"
    assert jnp.allclose(perp, perp_r, atol=1e-5, rtol=1e-5), "perplexity mismatch"

    # ---- multi-tile + row-padding test (grid of 3 tiles, last tile partially masked) ----
    B2, L2 = 2, 640   # N = 1280, block_rows = 512 -> 3 tiles, 256 padded rows
    x2 = jax.random.normal(kx2, (B2, L2, EMB_DIM), jnp.float32)
    zq2, idx2, loss2, perp2 = vector_quantizer_forward(x2, emb, block_rows=512)
    jax.block_until_ready((zq2, idx2, loss2, perp2))

    zq2_r, idx2_r, loss2_r, perp2_r = vq_reference(x2, emb)
    assert jnp.array_equal(idx2, idx2_r), "encoding indices mismatch (tiled)"
    assert jnp.allclose(zq2, zq2_r, atol=1e-5, rtol=1e-5), "quantized mismatch (tiled)"
    assert jnp.allclose(loss2, loss2_r, atol=1e-5, rtol=1e-5), "loss mismatch (tiled)"
    assert jnp.allclose(perp2, perp2_r, atol=1e-5, rtol=1e-5), "perplexity mismatch (tiled)"

    print("KERNEL_OK")
</pallas_src>

<mosaic_0001>
module attributes {stable_mosaic.version = 11 : i64} {
  func.func @vq_kernel(%arg0: i32, %arg1: memref<16x32xf32, #tpu.memory_space<vmem>>, %arg2: memref<16x32xf32, #tpu.memory_space<vmem>>, %arg3: memref<16x1xf32, #tpu.memory_space<vmem>>, %arg4: memref<16x32xf32, #tpu.memory_space<vmem>>, %arg5: memref<1x16xi32, #tpu.memory_space<vmem>>, %arg6: memref<1x1x1xf32, #tpu.memory_space<vmem>>, %arg7: memref<1x16x1xf32, #tpu.memory_space<vmem>>) attributes {dimension_semantics = [#tpu.dimension_semantics<parallel>], iteration_bounds = array<i64: 1>, scalar_prefetch = 0 : i64, scratch_operands = 0 : i64, tpu.core_type = #tpu.core_type<tc>, window_params = [{transform_indices = @transform_0, window_bounds = array<i64: 16, 32>}, {pipeline_mode = #tpu.pipeline_mode<synchronous>, transform_indices = @transform_1, window_bounds = array<i64: 16, 32>}, {pipeline_mode = #tpu.pipeline_mode<synchronous>, transform_indices = @transform_2, window_bounds = array<i64: 16, 1>}, {transform_indices = @transform_3, window_bounds = array<i64: 16, 32>}, {transform_indices = @transform_4, window_bounds = array<i64: 1, 16>}, {transform_indices = @transform_5, window_bounds = array<i64: 1, 1, 1>}, {transform_indices = @transform_6, window_bounds = array<i64: 1, 16, 1>}]} {
    %c0 = arith.constant 0 : index
    %c0_0 = arith.constant 0 : index
    %0 = vector.load %arg1[%c0, %c0_0] : memref<16x32xf32, #tpu.memory_space<vmem>>, vector<16x32xf32>
    %c0_1 = arith.constant 0 : index
    %c0_2 = arith.constant 0 : index
    %1 = vector.load %arg2[%c0_1, %c0_2] : memref<16x32xf32, #tpu.memory_space<vmem>>, vector<16x32xf32>
    %c0_3 = arith.constant 0 : index
    %c0_4 = arith.constant 0 : index
    %2 = vector.load %arg3[%c0_3, %c0_4] : memref<16x1xf32, #tpu.memory_space<vmem>>, vector<16x1xf32>
    %cst = arith.constant dense<0.000000e+00> : vector<16x16xf32>
    %3 = tpu.matmul %1, %0, %cst {dimension_numbers = #tpu.dot_dimension_numbers<[1], [1], [0], [0], [0, 0, 1, 0], [], []>} : vector<16x32xf32>, vector<16x32xf32>, vector<16x16xf32> -> vector<16x16xf32>
    %cst_5 = arith.constant 4.000000e+00 : f32
    %4 = vector.broadcast %cst_5 : f32 to vector<16x16xf32>
    %5 = arith.mulf %4, %3 : vector<16x16xf32>
    %6 = vector.broadcast %2 : vector<16x1xf32> to vector<16x16xf32>
    %7 = arith.subf %6, %5 : vector<16x16xf32>
    %cst_6 = arith.constant dense<0x7F800000> : vector<16xf32>
    %8 = vector.multi_reduction <minimumf>, %7, %cst_6 [0] : vector<16x16xf32> to vector<16xf32>
    %9 = vector.shape_cast %8 : vector<16xf32> to vector<1x16xf32>
    %10 = tpu.iota {dimensions = array<i32: 0>} : vector<16x16xi32>
    %11 = vector.broadcast %9 : vector<1x16xf32> to vector<16x16xf32>
    %12 = arith.cmpf oeq, %7, %11 : vector<16x16xf32>
    %c16_i32 = arith.constant 16 : i32
    %13 = vector.broadcast %c16_i32 : i32 to vector<16x16xi32>
    %14 = arith.select %12, %10, %13 : vector<16x16xi1>, vector<16x16xi32>
    %cst_7 = arith.constant dense<2147483647> : vector<16xi32>
    %15 = vector.multi_reduction <minsi>, %14, %cst_7 [0] : vector<16x16xi32> to vector<16xi32>
    %16 = vector.shape_cast %15 : vector<16xi32> to vector<1x16xi32>
    %17 = vector.broadcast %16 : vector<1x16xi32> to vector<16x16xi32>
    %18 = arith.cmpi eq, %10, %17 : vector<16x16xi32>
    %19 = arith.extui %18 : vector<16x16xi1> to vector<16x16xi32>
    %20 = arith.sitofp %19 : vector<16x16xi32> to vector<16x16xf32>
    %cst_8 = arith.constant dense<0.000000e+00> : vector<16x32xf32>
    %21 = tpu.matmul %20, %1, %cst_8 {dimension_numbers = #tpu.dot_dimension_numbers<[0], [0], [1], [1], [0, 1, 1, 1], [], []>} : vector<16x16xf32>, vector<16x32xf32>, vector<16x32xf32> -> vector<16x32xf32>
    %22 = arith.subf %21, %0 : vector<16x32xf32>
    %23 = arith.addf %0, %22 : vector<16x32xf32>
    %c0_9 = arith.constant 0 : index
    %c0_10 = arith.constant 0 : index
    %24 = vector.load %arg4[%c0_9, %c0_10] : memref<16x32xf32, #tpu.memory_space<vmem>>, vector<16x32xf32>
    tpu.vector_store %arg4[%c0_9, %c0_10], %23 {strides = array<i32>} : memref<16x32xf32, #tpu.memory_space<vmem>>, vector<16x32xf32>,
    %c0_11 = arith.constant 0 : index
    %c0_12 = arith.constant 0 : index
    %25 = vector.load %arg5[%c0_11, %c0_12] : memref<1x16xi32, #tpu.memory_space<vmem>>, vector<1x16xi32>
    tpu.vector_store %arg5[%c0_11, %c0_12], %16 {strides = array<i32>} : memref<1x16xi32, #tpu.memory_space<vmem>>, vector<1x16xi32>,
    %26 = arith.subf %21, %0 : vector<16x32xf32>
    %27 = arith.mulf %26, %26 : vector<16x32xf32>
    %28 = vector.shape_cast %27 : vector<16x32xf32> to vector<1x16x32xf32>
    %cst_13 = arith.constant dense<0.000000e+00> : vector<1xf32>
    %29 = vector.multi_reduction <add>, %28, %cst_13 [1, 2] : vector<1x16x32xf32> to vector<1xf32>
    %30 = vector.shape_cast %29 : vector<1xf32> to vector<1x1x1xf32>
    %31 = vector.extract %30[0, 0, 0] : f32 from vector<1x1x1xf32>
    %32 = vector.broadcast %31 : f32 to vector<1x1xf32>
    %c0_14 = arith.constant 0 : index
    %c0_15 = arith.constant 0 : index
    %c0_16 = arith.constant 0 : index
    %33 = vector.load %arg6[%c0_14, %c0_15, %c0_16] : memref<1x1x1xf32, #tpu.memory_space<vmem>>, vector<1x1x1xf32>
    %34 = vector.shape_cast %33 : vector<1x1x1xf32> to vector<1x1xf32>
    %35 = vector.shape_cast %32 : vector<1x1xf32> to vector<1x1x1xf32>
    tpu.vector_store %arg6[%c0_14, %c0_15, %c0_16], %35 {strides = array<i32>} : memref<1x1x1xf32, #tpu.memory_space<vmem>>, vector<1x1x1xf32>,
    %cst_17 = arith.constant dense<0.000000e+00> : vector<16xf32>
    %36 = vector.multi_reduction <add>, %20, %cst_17 [1] : vector<16x16xf32> to vector<16xf32>
    %37 = vector.shape_cast %36 : vector<16xf32> to vector<16x1xf32>
    %c0_18 = arith.constant 0 : index
    %c0_19 = arith.constant 0 : index
    %c0_20 = arith.constant 0 : index
    %38 = vector.load %arg7[%c0_18, %c0_19, %c0_20] : memref<1x16x1xf32, #tpu.memory_space<vmem>>, vector<1x16x1xf32>
    %39 = vector.shape_cast %38 : vector<1x16x1xf32> to vector<16x1xf32>
    %40 = vector.shape_cast %37 : vector<16x1xf32> to vector<1x16x1xf32>
    tpu.vector_store %arg7[%c0_18, %c0_19, %c0_20], %40 {strides = array<i32>} : memref<1x16x1xf32, #tpu.memory_space<vmem>>, vector<1x16x1xf32>,
    return
  }
  func.func @transform_0(%arg0: i32) -> (i32, i32) {
    %c0_i32 = arith.constant 0 : i32
    %c0_i32_0 = arith.constant 0 : i32
    return %arg0, %c0_i32 : i32, i32
  }
  func.func @transform_1(%arg0: i32) -> (i32, i32) {
    %c0_i32 = arith.constant 0 : i32
    %c0_i32_0 = arith.constant 0 : i32
    %c0_i32_1 = arith.constant 0 : i32
    return %c0_i32, %c0_i32_0 : i32, i32
  }
  func.func @transform_2(%arg0: i32) -> (i32, i32) {
    %c0_i32 = arith.constant 0 : i32
    %c0_i32_0 = arith.constant 0 : i32
    %c0_i32_1 = arith.constant 0 : i32
    return %c0_i32, %c0_i32_0 : i32, i32
  }
  func.func @transform_3(%arg0: i32) -> (i32, i32) {
    %c0_i32 = arith.constant 0 : i32
    %c0_i32_0 = arith.constant 0 : i32
    return %arg0, %c0_i32 : i32, i32
  }
  func.func @transform_4(%arg0: i32) -> (i32, i32) {
    %c0_i32 = arith.constant 0 : i32
    %c0_i32_0 = arith.constant 0 : i32
    return %c0_i32, %arg0 : i32, i32
  }
  func.func @transform_5(%arg0: i32) -> (i32, i32, i32) {
    %c0_i32 = arith.constant 0 : i32
    %c0_i32_0 = arith.constant 0 : i32
    %c0_i32_1 = arith.constant 0 : i32
    return %arg0, %c0_i32, %c0_i32_0 : i32, i32, i32
  }
  func.func @transform_6(%arg0: i32) -> (i32, i32, i32) {
    %c0_i32 = arith.constant 0 : i32
    %c0_i32_0 = arith.constant 0 : i32
    %c0_i32_1 = arith.constant 0 : i32
    return %arg0, %c0_i32, %c0_i32_0 : i32, i32, i32
  }
}

</mosaic_0001>

<llo_original>
// kernel: squeeze.2
$region0: #{squeeze.2}
  %s0 = inlined_call_operand.vmem [shape: s32[16], index: 0, kind: input, shape index: {}]
  %s1 = inlined_call_operand.hbm [shape: s32[2,8], index: 1, kind: output, shape index: {}]
  $region1: #{squeeze.2} parent=0
    #allocation0 [shape = 'u8[1024]{0}', space=vmem, size = 0x400, scoped, tag = 'operand span for operand 1']
    #allocation1 [shape = 's32[1]{0}', space=sflag, size = 0x4, scoped, tag = 'scoped memory for squeeze.2']
    #allocation2 [shape = 'u8[4096]{0}', space=vmem, size = 0x1000, scoped, tag = 'scoped mem for output reshape']
    #allocation3 [shape = 'u8[4096]{0}', space=vmem, size = 0x1000, scoped, tag = 'scoped mem for input reshape']
    %2 = vsyncpa [#allocation1], 0
    %s4 = ssub.s32 2, 1
    %v5 = vld [vmem:[%s0] sm:%s4]
    %6 = vst [vmem:[#allocation3] sm:%s4] %v5
    %v7 = vld [vmem:[#allocation3] sm:$0x1]
    %vm8 = vcmask 64512
    %9 = vst.msk [vmem:[#allocation2] sm:$0x1] %vm8, %v7
    %v10 = vld [vmem:[#allocation3] sm:$0x1]
    %11 = vrot.lane.b32.xlu0 %v10, 120
    %v12 = vpop.permute.xlu0 %11
    %vm13 = vcmask 64512
    %s14 = scalar_lea.vmem [#allocation2], 1
    %15 = vst.msk [vmem:[%s14] sm:$0x1] %vm13, %v12
    %s17 = ssub.s32 4, 1
    %v18 = vld [vmem:[#allocation2] sm:%s17]
    %s20 = ssub.s32 4, 1
    %21 = vst [vmem:[#allocation0] sm:%s20] %v18
    %23 = vsyncadd [#allocation1], 0
    %s25 = sshll.u32 [#allocation0], 4
    %s26 = int_to_ptr.vmem [resolvable:$true] %s25
    %s27 = sshll.u32 %s1, 4
    %s28 = int_to_ptr.hbm [resolvable:$true] %s27
    %30 = dma.vmem_to_hbm [thread:$0]  %s26, 32, %s28, [#allocation1]
    %32 = dma.done [#allocation1], 32
    %33 = vsyncpa [#allocation1], 1

// kernel: vector_quantizer_forward.1
$region0: #{vector_quantizer_forward.1}
  #allocation0 [shape = 'u32[]', space=smem, size = 0x4, offset = 0x4, fixed_abs, tag = 'smem constant byte address 0x4 - core index']
  #allocation1 [shape = 'u32[72,128]{1,0:T(1,128)}', space=vmem, size = 0x9000, scoped, tag = 'internal scratch']
  %s0 = inlined_call_operand.vmem [shape: f32[16,32], index: 0, kind: input, shape index: {}]
  %s1 = inlined_call_operand.vmem [shape: f32[16,32], index: 1, kind: input, shape index: {}]
  %s2 = inlined_call_operand.vmem [shape: f32[16,1], index: 2, kind: input, shape index: {}]
  %s3 = inlined_call_operand.hbm [shape: f32[16,32], index: 3, kind: output, shape index: {0}]
  %s4 = inlined_call_operand.vmem [shape: s32[1,16], index: 4, kind: output, shape index: {1}]
  %s5 = inlined_call_operand.hbm [shape: f32[1,1,1], index: 5, kind: output, shape index: {2}]
  %s6 = inlined_call_operand.vmem [shape: f32[1,16,1], index: 6, kind: output, shape index: {3}]
  %7 = xla_tuple %s3, %s4, %s5, %s6
  %s8 = sld [smem:[#allocation0]]
  $region46: #{vector_quantizer_forward.1} parent=0
    _
  %s10 = ssub.s32 1, %s8
  %s11 = scalar_select 0, %s10, %s8
  $region1: #{vector_quantizer_forward.1} parent=0
    #allocation2 [shape = 'u8[8192]{0}', space=vmem, size = 0x2000, scoped, tag = 'output window, operand 0, single buffered']
    #allocation3 [shape = 's32[1]{0}', space=sflag, size = 0x4, scoped, tag = 'scoped memory for vector_quantizer_forward.1']
    #allocation4 [shape = 'u8[512]{0}', space=vmem, size = 0x400, scoped, tag = 'output window, operand 2, single buffered']
    #allocation5 [shape = 's32[1]{0}', space=sflag, size = 0x4, scoped, tag = 'scoped memory for vector_quantizer_forward.1']
    %12 = vsyncpa [#allocation3], 0
    %13 = vsyncpa [#allocation5], 0
    // Predicated region
    $region2: #{vector_quantizer_forward.1} parent=1 // pred_check
      _
    $region3: #{vector_quantizer_forward.1} parent=1 // pred_check_branch
      %15 = sbr.rel (0) target = $region5
    $region4: #{vector_quantizer_forward.1} parent=1 // pred_region
      _
    $region5: #{vector_quantizer_forward.1} parent=1 // pred_fallthru
      _
    // Predicated region
    $region6: #{vector_quantizer_forward.1} parent=1 // pred_check
      _
    $region7: #{vector_quantizer_forward.1} parent=1 // pred_check_branch
      %17 = sbr.rel (0) target = $region9
    $region8: #{vector_quantizer_forward.1} parent=1 // pred_region
      _
    $region9: #{vector_quantizer_forward.1} parent=1 // pred_fallthru
      _
    // Predicated region
    $region10: #{vector_quantizer_forward.1} parent=1 // pred_check
      _
    $region11: #{vector_quantizer_forward.1} parent=1 // pred_check_branch
      %19 = sbr.rel (0) target = $region13
    $region12: #{vector_quantizer_forward.1} parent=1 // pred_region
      _
    $region13: #{vector_quantizer_forward.1} parent=1 // pred_fallthru
      _
    %v20 = vld [vmem:[%s0] sm:$0xff]
    %v21 = vld [vmem:[%s0 + $0x8] sm:$0xff]
    %v22 = vld [vmem:[%s1] sm:$0xff]
    %v23 = vld [vmem:[%s1 + $0x8] sm:$0xff]
    %v24 = vld [vmem:[%s2] sm:$0xff]
    %v25 = vld [vmem:[%s2 + $0x8] sm:$0xff]
    %vm26 = vcmask 261120
    %v28 = vsel %vm26, %v22, 0
    %v31 = vsel %vm26, %v23, 0
    %v34 = vsel %vm26, %v20, 0
    %v37 = vsel %vm26, %v21, 0
    %39 = vmatpush.xpose.msra.mxu0 0.0
    %40 = vmatpush.xpose.msra.mxu0 0.0
    %41 = vmatpush.xpose.msra.mxu0 0.0
    %42 = vmatpush.xpose.msra.mxu0 0.0
    %43 = vmatpush.xpose.msra.mxu0 0.0
    %44 = vmatpush.xpose.msra.mxu0 0.0
    %45 = vmatpush.xpose.msra.mxu0 0.0
    %46 = vmatpush.xpose.msra.mxu0 0.0
    %47 = vmatpush.xpose.msra.mxu0 0.0
    %48 = vmatpush.xpose.msra.mxu0 0.0
    %49 = vmatpush.xpose.msra.mxu0 0.0
    %50 = vmatpush.xpose.msra.mxu0 0.0
    %51 = vmatpush.xpose.msra.mxu0 0.0
    %52 = vmatpush.xpose.msra.mxu0 0.0
    %53 = vmatpush.xpose.msra.mxu0 %v37
    %54 = vmatpush.xpose.msra.mxu0 %v34
    %55 = vmatmul.f32.gmra.mxu0 %v28
    %v56 = vpop.f32.mrf.mxu0
    %v57 = vadd.f32 0.0, %v56
    %58 = vmatmul.f32.gmra.mxu0 %v31
    %v59 = vpop.f32.mrf.mxu0
    %v60 = vadd.f32 0.0, %v59
    %61 = vdwg.mxu0
    %v62 = vmul.f32 %v57, 4.0
    %v63 = vmul.f32 %v60, 4.0
    %65 = vset.pattern.permute.xlu0 0
    %66 = vperm.xlu0 %65, %v24
    %v67 = vpop.permute.xlu0 %66
    %70 = vset.pattern.permute.xlu0 0
    %71 = vperm.xlu0 %70, %v25
    %v72 = vpop.permute.xlu0 %71
    %v74 = vsub.f32 %v67, %v62
    %v75 = vsub.f32 %v72, %v63
    %vm76 = vcmask 130048
    %v77 = vsel %vm76, %v74, inf
    %v78 = vsel %vm76, %v75, inf
    %v79 = vmin.f32 %v77, %v78
    %v80 = vrot.slane %v79, 4
    %v81 = vmin.f32 %v79, %v80
    %v82 = vrot.slane %v81, 2
    %v83 = vmin.f32 %v81, %v82
    %v84 = vrot.slane %v83, 1
    %v85 = vmin.f32 %v83, %v84
    %v86 = vlaneseq
    %v87 = vshrl.u32 %v86, 7
    %v88 = vadd.s32 %v87, 8
    %vm89 = vcmp.eq.f32.partialorder %v74, %v85
    %vm90 = vcmp.eq.f32.partialorder %v75, %v85
    %v91 = vsel %vm89, %v87, 16
    %v92 = vsel %vm90, %v88, 16
    %v93 = vsel %vm76, %v91, 2147483647
    %v94 = vsel %vm76, %v92, 2147483647
    %vm95 = vcmp.lt.s32.totalorder %v93, %v94
    %v96 = vsel %vm95, %v93, %v94
    %v97 = vrot.slane %v96, 4
    %vm98 = vcmp.lt.s32.totalorder %v96, %v97
    %v99 = vsel %vm98, %v96, %v97
    %v100 = vrot.slane %v99, 2
    %vm101 = vcmp.lt.s32.totalorder %v99, %v100
    %v102 = vsel %vm101, %v99, %v100
    %v103 = vrot.slane %v102, 1
    %vm104 = vcmp.lt.s32.totalorder %v102, %v103
    %v105 = vsel %vm104, %v102, %v103
    %vm106 = vcmp.eq.s32.totalorder %v87, %v105
    %vm107 = vcmp.eq.s32.totalorder %v88, %v105
    %v108 = vsel %vm106, 1, 0
    %v109 = vsel %vm107, 1, 0
    %v110 = vcvt.s32.f32 %v108
    %v111 = vcvt.s32.f32 %v109
    %112 = vxpose.xlu0.b32.start [1/16] %v110, 128
    %113 = vxpose.xlu0.b32.cont [2/16] %v111, 128
    %114 = vxpose.xlu0.b32.cont [3/16] 0.0, 128
    %115 = vxpose.xlu0.b32.cont [4/16] 0.0, 128
    %116 = vxpose.xlu0.b32.cont [5/16] 0.0, 128
    %117 = vxpose.xlu0.b32.cont [6/16] 0.0, 128
    %118 = vxpose.xlu0.b32.cont [7/16] 0.0, 128
    %119 = vxpose.xlu0.b32.cont [8/16] 0.0, 128
    %120 = vxpose.xlu0.b32.cont [9/16] 0.0, 128
    %121 = vxpose.xlu0.b32.cont [10/16] 0.0, 128
    %122 = vxpose.xlu0.b32.cont [11/16] 0.0, 128
    %123 = vxpose.xlu0.b32.cont [12/16] 0.0, 128
    %124 = vxpose.xlu0.b32.cont [13/16] 0.0, 128
    %125 = vxpose.xlu0.b32.cont [14/16] 0.0, 128
    %126 = vxpose.xlu0.b32.cont [15/16] 0.0, 128
    %127 = vxpose.xlu0.b32.end [16/16] 0.0, 128
    %v128 = vpop.trf.xlu0
    %v129 = vpop.trf.xlu0
    %v130 = vpop.trf.xlu0
    %v131 = vpop.trf.xlu0
    %v132 = vpop.trf.xlu0
    %v133 = vpop.trf.xlu0
    %v134 = vpop.trf.xlu0
    %v135 = vpop.trf.xlu0
    %v136 = vpop.trf.xlu0
    %v137 = vpop.trf.xlu0
    %v138 = vpop.trf.xlu0
    %v139 = vpop.trf.xlu0
    %v140 = vpop.trf.xlu0
    %v141 = vpop.trf.xlu0
    %v142 = vpop.trf.xlu0
    %v143 = vpop.trf.xlu0
    %v145 = vsel %vm76, %v128, 0
    %v148 = vsel %vm76, %v129, 0
    %150 = vmatpush.msra.mxu0 0.0
    %151 = vmatpush.msra.mxu0 0.0
    %152 = vmatpush.msra.mxu0 0.0
    %153 = vmatpush.msra.mxu0 0.0
    %154 = vmatpush.msra.mxu0 0.0
    %155 = vmatpush.msra.mxu0 0.0
    %156 = vmatpush.msra.mxu0 0.0
    %157 = vmatpush.msra.mxu0 0.0
    %158 = vmatpush.msra.mxu0 0.0
    %159 = vmatpush.msra.mxu0 0.0
    %160 = vmatpush.msra.mxu0 0.0
    %161 = vmatpush.msra.mxu0 0.0
    %162 = vmatpush.msra.mxu0 0.0
    %163 = vmatpush.msra.mxu0 0.0
    %164 = vmatpush.msra.mxu0 %v23
    %165 = vmatpush.msra.mxu0 %v22
    %166 = vmatmul.f32.gmra.mxu0 %v145
    %v167 = vpop.f32.mrf.mxu0
    %v168 = vadd.f32 0.0, %v167
    %169 = vmatmul.f32.gmra.mxu0 %v148
    %v170 = vpop.f32.mrf.mxu0
    %v171 = vadd.f32 0.0, %v170
    %172 = vdwg.mxu0
    %v173 = vsub.f32 %v168, %v20
    %v174 = vsub.f32 %v171, %v21
    %v175 = vadd.f32 %v20, %v173
    %v176 = vadd.f32 %v21, %v174
    %177 = vst.msk [vmem:[#allocation2] sm:$0xff] %vm26, %v175
    %178 = vst.msk [vmem:[#allocation2 + $0x8] sm:$0xff] %vm26, %v176
    %vm179 = vcmask 122880
    %180 = vst.msk [vmem:[%s4] sm:$0x1] %vm179, %v105
    %v181 = vmul.f32 %v173, %v173
    %v182 = vmul.f32 %v174, %v174
    %v183 = vsel %vm26, %v181, 0.0
    %v184 = vsel %vm26, %v182, 0.0
    %v185 = vadd.f32 %v183, %v184
    %186 = vadd.xlane.f32.xlu0 %v185
    %v187 = vpop.xlane.xlu0 %186
    %v188 = vrot.slane %v187, 4
    %v189 = vadd.f32 %v187, %v188
    %v190 = vrot.slane %v189, 2
    %v191 = vadd.f32 %v189, %v190
    %v192 = vrot.slane %v191, 1
    %v193 = vadd.f32 %v191, %v192
    %s194 = vtos %v193
    %v195 = vstv %s194
    %vm196 = vcmask 0
    %197 = vst.msk [vmem:[#allocation4] sm:$0x1] %vm196, %v195
    %v198 = vsel %vm76, %v110, 0.0
    %199 = vadd.xlane.f32.xlu0 %v198
    %v200 = vpop.xlane.xlu0 %199
    %v201 = vsel %vm76, %v111, 0.0
    %202 = vadd.xlane.f32.xlu0 %v201
    %v203 = vpop.xlane.xlu0 %202
    %vm204 = vcmask 7168
    %205 = vst.msk [vmem:[%s6] sm:$0xff] %vm204, %v200
    %206 = vst.msk [vmem:[%s6 + $0x8] sm:$0xff] %vm204, %v203
    // Predicated region
    $region14: #{vector_quantizer_forward.1} parent=1 // pred_check
      _
    $region15: #{vector_quantizer_forward.1} parent=1 // pred_check_branch
      %208 = sbr.rel (0) target = $region17
    $region16: #{vector_quantizer_forward.1} parent=1 // pred_region
      %210 = vsyncadd [#allocation3], 0
      %s211 = sshll.u32 [#allocation2], 4
      %s212 = int_to_ptr.vmem [resolvable:$true] %s211
      %s213 = sshll.u32 %s3, 4
      %s214 = int_to_ptr.hbm [resolvable:$true] %s213
      %219 = dma.vmem_to_hbm [thread:$0]  %s212, 256, %s214, [#allocation3], 128, 128, 8
    $region17: #{vector_quantizer_forward.1} parent=1 // pred_fallthru
      _
    // Predicated region
    $region18: #{vector_quantizer_forward.1} parent=1 // pred_check
      _
    $region19: #{vector_quantizer_forward.1} parent=1 // pred_check_branch
      %221 = sbr.rel (0) target = $region21
    $region20: #{vector_quantizer_forward.1} parent=1 // pred_region
      _
    $region21: #{vector_quantizer_forward.1} parent=1 // pred_fallthru
      _
    // Predicated region
    $region22: #{vector_quantizer_forward.1} parent=1 // pred_check
      _
    $region23: #{vector_quantizer_forward.1} parent=1 // pred_check_branch
      %223 = sbr.rel (0) target = $region25
    $region24: #{vector_quantizer_forward.1} parent=1 // pred_region
      %225 = vsyncadd [#allocation5], 0
      %s227 = sshll.u32 [#allocation4], 4
      %s228 = int_to_ptr.vmem [resolvable:$true] %s227
      %s229 = sshll.u32 %s5, 4
      %s230 = int_to_ptr.hbm [resolvable:$true] %s229
      %232 = dma.vmem_to_hbm [thread:$0]  %s228, 16, %s230, [#allocation5]
    $region25: #{vector_quantizer_forward.1} parent=1 // pred_fallthru
      _
    // Predicated region
    $region26: #{vector_quantizer_forward.1} parent=1 // pred_check
      _
    $region27: #{vector_quantizer_forward.1} parent=1 // pred_check_branch
      %234 = sbr.rel (0) target = $region29
    $region28: #{vector_quantizer_forward.1} parent=1 // pred_region
      _
    $region29: #{vector_quantizer_forward.1} parent=1 // pred_fallthru
      _
    // Predicated region
    $region30: #{vector_quantizer_forward.1} parent=1 // pred_check
      _
    $region31: #{vector_quantizer_forward.1} parent=1 // pred_check_branch
      %236 = sbr.rel (0) target = $region33
    $region32: #{vector_quantizer_forward.1} parent=1 // pred_region
      %238 = dma.done [#allocation3], 256
    $region33: #{vector_quantizer_forward.1} parent=1 // pred_fallthru
      _
    // Predicated region
    $region34: #{vector_quantizer_forward.1} parent=1 // pred_check
      _
    $region35: #{vector_quantizer_forward.1} parent=1 // pred_check_branch
      %240 = sbr.rel (0) target = $region37
    $region36: #{vector_quantizer_forward.1} parent=1 // pred_region
      _
    $region37: #{vector_quantizer_forward.1} parent=1 // pred_fallthru
      _
    // Predicated region
    $region38: #{vector_quantizer_forward.1} parent=1 // pred_check
      _
    $region39: #{vector_quantizer_forward.1} parent=1 // pred_check_branch
      %242 = sbr.rel (0) target = $region41
    $region40: #{vector_quantizer_forward.1} parent=1 // pred_region
      %244 = dma.done [#allocation5], 16
    $region41: #{vector_quantizer_forward.1} parent=1 // pred_fallthru
      _
    // Predicated region
    $region42: #{vector_quantizer_forward.1} parent=1 // pred_check
      _
    $region43: #{vector_quantizer_forward.1} parent=1 // pred_check_branch
      %246 = sbr.rel (0) target = $region45
    $region44: #{vector_quantizer_forward.1} parent=1 // pred_region
      _
    $region45: #{vector_quantizer_forward.1} parent=1 // pred_fallthru
      _
    %247 = vsyncpa [#allocation3], 1
    %248 = vsyncpa [#allocation5], 1

</llo_original>
